<compile_context>
chip_gen: v7x
topology: tpu7x:2x2x1
jax: 0.10.0
libtpu: 0.0.40
codegen_flags: <defaults>
</compile_context>

<pallas_src>
import jax
import jax.numpy as jnp
from jax.experimental import pallas as pl
from jax.experimental.pallas import tpu as pltpu


def _first_max_row(x):
    """Per-column index of the FIRST row attaining the max (torch.argmax rule).

    x: [R, C] f32.  Returns (hard [1, C] f32 row index, onehot [R, C] f32).
    """
    r = x.shape[0]
    maxv = jnp.max(x, axis=0, keepdims=True)                               # [1, C]
    row = jax.lax.broadcasted_iota(jnp.int32, x.shape, 0).astype(jnp.float32)
    hard = jnp.min(jnp.where(x == maxv, row, float(r)), axis=0, keepdims=True)
    return hard, (row == hard).astype(jnp.float32)


def perf_eval_kernel(node_ref, edge_ref, out_ref):
    packed = node_ref[...]                  # [S+4, N] lane-dense node data
    S = packed.shape[0] - 4
    assign_t = packed[0:S, :]               # [S, N] soft shard assignments
    feats_t = packed[S:S + 4, :]            # [4, N] rows = [ones, cpu, mem, sec]

    # ---- hard assignment (argmax over shards) + one-hot ---------------------
    hard_row, onehot_sn = _first_max_row(assign_t)                         # [1,N], [S,N]

    # ---- per-shard masked sums fused into ONE MXU dot (exact f32) -----------
    # stats[f, s] = sum_n feats_t[f, n] * onehot_sn[s, n]
    stats = jax.lax.dot_general(feats_t, onehot_sn,
                                (((1,), (1,)), ((), ())),
                                preferred_element_type=jnp.float32,
                                precision=jax.lax.Precision.HIGHEST)       # [4, S]
    sizes = stats[0:1, :]                                                  # [1, S]
    sum_cpu = stats[1:2, :]
    sum_mem = stats[2:3, :]
    sum_sec = stats[3:4, :]

    # num_shards = max(hard_assignment) + 1  (matches the torch reference)
    max_shard = jnp.max(hard_row, axis=1, keepdims=True)                   # [1, 1]
    s_iota = jax.lax.broadcasted_iota(jnp.int32, (1, S), 1).astype(jnp.float32)
    valid = s_iota <= max_shard                                            # [1, S]
    nonempty = sizes > 0.0                                                 # [1, S]

    # size * (mean_cpu + mean_mem) / 2 == (sum_cpu + sum_mem) / 2 exactly.
    weighted = jnp.where(valid & nonempty, 0.5 * (sum_cpu + sum_mem), 0.0)

    n_valid = jnp.sum(valid.astype(jnp.float32), axis=1, keepdims=True)    # [1, 1]
    mean_size = jnp.sum(weighted, axis=1, keepdims=True) / n_valid
    # torch.std: unbiased (n-1), no clamp -> one valid shard gives NaN like torch.
    var = jnp.sum(jnp.where(valid, (weighted - mean_size) ** 2, 0.0),
                  axis=1, keepdims=True) / (n_valid - 1.0)
    balance = jnp.clip(1.0 - jnp.sqrt(var) / (mean_size + 1e-8), 0.0, 1.0)

    # ---- cross-shard tx rate: O(S*E), no gather op, no [N,E] buffers --------
    # Endpoint soft rows were gathered lane-dense in the wrapper; recompute the
    # per-endpoint argmax (identical first-max rule on identical values).
    au = edge_ref[0]                                                       # [S, E]
    av = edge_ref[1]                                                       # [S, E]
    hu, _ = _first_max_row(au)                                             # [1, E]
    hv, _ = _first_max_row(av)                                             # [1, E]
    E = au.shape[1]
    cross = jnp.sum((hu != hv).astype(jnp.float32), axis=1, keepdims=True)
    cross_rate = jnp.clip(cross * (1.0 / float(E)), 0.0, 1.0)
    # TODO(synk): for very large E add an edge-tile grid axis ("parallel" so
    # both v7x TensorCores split it; pl.Buffered(3) on v5e) with a pl.when-
    # finalized cross accumulator; unnecessary at O(S*E) per-edge cost.

    # ---- security: min over non-empty shards of mean(consensus[:, 0]) ------
    mean_sec = sum_sec / jnp.maximum(sizes, 1.0)                           # exact divide
    masked_sec = jnp.where(valid & nonempty, mean_sec, 1e9)                # [1, S]
    security = jnp.minimum(1.0, jnp.min(masked_sec, axis=1, keepdims=True))

    # ---- pack the 3 metrics into one full (8, 128) tile (unmasked store) ----
    lane = jax.lax.broadcasted_iota(jnp.int32, (8, 128), 1)
    out_ref[...] = jnp.where(lane == 0, balance,
                             jnp.where(lane == 1, cross_rate,
                                       jnp.where(lane == 2, security, 0.0)))


def performance_evaluator(shard_assignments, hardware, consensus, edge_index):
    """Mirrors PerformanceEvaluator.forward (edge_index-provided path).

    Returns a dict of scalar f32 metrics.
    """
    # TODO(synk): edge_index=None path (_estimate_cross_shard_rate via pairwise
    # cosine similarity of per-shard topology means) not implemented; the
    # example always supplies edge_index.
    # TODO(synk): entropy-weight adjustment + performance history are host-side
    # Python state (a no-op for the first 3 calls) and are not part of the kernel.
    N = shard_assignments.shape[0]

    assign = jnp.asarray(shard_assignments, jnp.float32)                   # [N, S]
    # TODO(synk): at large N have the producer emit [S, N] directly (or fuse
    # this transpose into the preceding op) to avoid an extra HBM round trip.
    assign_t = assign.T                                                    # [S, N]

    # Single lane-dense node input: [assign; ones; cpu; mem; sec] -> [S+4, N].
    feats_t = jnp.concatenate(
        [jnp.ones((1, N), jnp.float32),
         jnp.asarray(hardware, jnp.float32)[:, 0:2].T,
         jnp.asarray(consensus, jnp.float32)[:, 0:1].T], axis=0)           # [4, N]
    node_packed = jnp.concatenate([assign_t, feats_t], axis=0)             # [S+4, N]

    # O(E*S) XLA gather of the per-edge endpoint soft-assignment rows,
    # lane-dense [2, S, E] (replaces the old O(N*E) in-kernel one-hot matmul).
    edges = jnp.asarray(edge_index, jnp.int32)                             # [2, E]
    edge_assign = jnp.stack([jnp.take(assign_t, edges[0], axis=1),
                             jnp.take(assign_t, edges[1], axis=1)], axis=0)

    out = pl.pallas_call(
        perf_eval_kernel,
        out_shape=jax.ShapeDtypeStruct((8, 128), jnp.float32),
        in_specs=[pl.BlockSpec(memory_space=pltpu.MemorySpace.VMEM)] * 2,
        out_specs=pl.BlockSpec(memory_space=pltpu.MemorySpace.VMEM),
        # Tiny working set now that the O(N*E) buffer is gone; 32 MiB is safe
        # on every generation (v5e/v6e/v7x) while leaving pipelining headroom.
        compiler_params=pltpu.CompilerParams(vmem_limit_bytes=32 * 1024 * 1024),
    )(node_packed, edge_assign)

    return {
        "balance_score": out[0, 0],
        "cross_tx_rate": out[0, 1],
        "security_score": out[0, 2],
    }


def init_unused_params(key, feature_dims):
    """Deterministic init of parameters declared in __init__ but unused by
    forward() (layer_weights + metric_predictors MLPs)."""
    def mlp(k, d_in, d_h):
        k1, k2 = jax.random.split(k)
        return {
            "w1": jax.random.normal(k1, (d_in, d_h), jnp.float32) * 0.02,
            "b1": jnp.zeros((d_h,), jnp.float32),
            "w2": jax.random.normal(k2, (d_h, 1), jnp.float32) * 0.02,
            "b2": jnp.zeros((1,), jnp.float32),
        }
    kb, kc, ks = jax.random.split(key, 3)
    hw = feature_dims.get("hardware", 17)
    topo = feature_dims.get("topology", 20)
    sem = feature_dims.get("semantic", 32)
    con = feature_dims.get("consensus", 3)
    return {
        "layer_weights": {
            "hardware_to_balance": jnp.float32(0.6),
            "topo_to_balance": jnp.float32(0.4),
            "semantic_to_cross": jnp.float32(0.7),
            "topo_to_cross": jnp.float32(0.3),
        },
        "metric_predictors": {
            "balance": mlp(kb, hw + topo, 64),
            "cross_shard": mlp(kc, sem + topo, 64),
            "security": mlp(ks, con, 32),
        },
    }


if __name__ == "__main__":
    key = jax.random.PRNGKey(0)
    k1, k2, k3, k4, k5 = jax.random.split(key, 5)

    N, S, E = 64, 4, 128            # num_nodes, num_shards, num_edges
    DH, DC = 17, 3                  # hardware dim, consensus dim

    shard_assignments = jax.random.uniform(k1, (N, S), jnp.float32)
    hardware = jax.random.uniform(k2, (N, DH), jnp.float32)
    consensus = jax.random.uniform(k3, (N, DC), jnp.float32)
    edge_index = jax.random.randint(k4, (2, E), 0, N, dtype=jnp.int32)

    # Parameters from __init__ (unused by forward, initialized for fidelity).
    _params = init_unused_params(k5, {"hardware": DH, "topology": 20,
                                      "semantic": 32, "consensus": DC})

    metrics = performance_evaluator(shard_assignments, hardware, consensus,
                                    edge_index)
    jax.block_until_ready(metrics)
    print("KERNEL_OK")
</pallas_src>

<mosaic_0001>
module attributes {stable_mosaic.version = 11 : i64} {
  func.func @perf_eval_kernel(%arg0: memref<8x64xf32, #tpu.memory_space<vmem>>, %arg1: memref<2x4x128xf32, #tpu.memory_space<vmem>>, %arg2: memref<8x128xf32, #tpu.memory_space<vmem>>) attributes {dimension_semantics = [], scalar_prefetch = 0 : i64, scratch_operands = 0 : i64, tpu.core_type = #tpu.core_type<tc>} {
    %c0 = arith.constant 0 : index
    %c0_0 = arith.constant 0 : index
    %0 = vector.load %arg0[%c0, %c0_0] : memref<8x64xf32, #tpu.memory_space<vmem>>, vector<8x64xf32>
    %1 = vector.extract_strided_slice %0 {offsets = [0, 0], sizes = [4, 64], strides = [1, 1]} : vector<8x64xf32> to vector<4x64xf32>
    %2 = vector.extract_strided_slice %0 {offsets = [4, 0], sizes = [4, 64], strides = [1, 1]} : vector<8x64xf32> to vector<4x64xf32>
    %cst = arith.constant dense<0xFF800000> : vector<64xf32>
    %3 = vector.multi_reduction <maximumf>, %1, %cst [0] : vector<4x64xf32> to vector<64xf32>
    %4 = vector.shape_cast %3 : vector<64xf32> to vector<1x64xf32>
    %5 = tpu.iota {dimensions = array<i32: 0>} : vector<4x64xi32>
    %6 = arith.sitofp %5 : vector<4x64xi32> to vector<4x64xf32>
    %7 = vector.broadcast %4 : vector<1x64xf32> to vector<4x64xf32>
    %8 = arith.cmpf oeq, %1, %7 : vector<4x64xf32>
    %cst_1 = arith.constant 4.000000e+00 : f32
    %9 = vector.broadcast %cst_1 : f32 to vector<4x64xf32>
    %10 = arith.select %8, %6, %9 : vector<4x64xi1>, vector<4x64xf32>
    %cst_2 = arith.constant dense<0x7F800000> : vector<64xf32>
    %11 = vector.multi_reduction <minimumf>, %10, %cst_2 [0] : vector<4x64xf32> to vector<64xf32>
    %12 = vector.shape_cast %11 : vector<64xf32> to vector<1x64xf32>
    %13 = vector.broadcast %12 : vector<1x64xf32> to vector<4x64xf32>
    %14 = arith.cmpf oeq, %6, %13 : vector<4x64xf32>
    %15 = arith.extui %14 : vector<4x64xi1> to vector<4x64xi32>
    %16 = arith.sitofp %15 : vector<4x64xi32> to vector<4x64xf32>
    %cst_3 = arith.constant dense<0.000000e+00> : vector<4x4xf32>
    %17 = tpu.matmul %2, %16, %cst_3 {dimension_numbers = #tpu.dot_dimension_numbers<[1], [1], [0], [0], [0, 0, 1, 0], [], []>, precision = #tpu.contract_precision<fp32>} : vector<4x64xf32>, vector<4x64xf32>, vector<4x4xf32> -> vector<4x4xf32>
    %18 = vector.extract_strided_slice %17 {offsets = [0, 0], sizes = [1, 4], strides = [1, 1]} : vector<4x4xf32> to vector<1x4xf32>
    %19 = vector.extract_strided_slice %17 {offsets = [1, 0], sizes = [1, 4], strides = [1, 1]} : vector<4x4xf32> to vector<1x4xf32>
    %20 = vector.extract_strided_slice %17 {offsets = [2, 0], sizes = [1, 4], strides = [1, 1]} : vector<4x4xf32> to vector<1x4xf32>
    %21 = vector.extract_strided_slice %17 {offsets = [3, 0], sizes = [1, 4], strides = [1, 1]} : vector<4x4xf32> to vector<1x4xf32>
    %cst_4 = arith.constant dense<0xFF800000> : vector<1xf32>
    %22 = vector.multi_reduction <maximumf>, %12, %cst_4 [1] : vector<1x64xf32> to vector<1xf32>
    %23 = vector.shape_cast %22 : vector<1xf32> to vector<1x1xf32>
    %24 = tpu.iota {dimensions = array<i32: 1>} : vector<1x4xi32>
    %25 = arith.sitofp %24 : vector<1x4xi32> to vector<1x4xf32>
    %26 = vector.broadcast %23 : vector<1x1xf32> to vector<1x4xf32>
    %27 = arith.cmpf ole, %25, %26 : vector<1x4xf32>
    %cst_5 = arith.constant 0.000000e+00 : f32
    %28 = vector.broadcast %cst_5 : f32 to vector<1x4xf32>
    %29 = arith.cmpf ogt, %18, %28 : vector<1x4xf32>
    %30 = arith.andi %27, %29 : vector<1x4xi1>
    %31 = arith.addf %19, %20 : vector<1x4xf32>
    %cst_6 = arith.constant 5.000000e-01 : f32
    %32 = vector.broadcast %cst_6 : f32 to vector<1x4xf32>
    %33 = arith.mulf %32, %31 : vector<1x4xf32>
    %cst_7 = arith.constant 0.000000e+00 : f32
    %34 = vector.broadcast %cst_7 : f32 to vector<1x4xf32>
    %35 = arith.select %30, %33, %34 : vector<1x4xi1>, vector<1x4xf32>
    %36 = arith.extui %27 : vector<1x4xi1> to vector<1x4xi32>
    %37 = arith.sitofp %36 : vector<1x4xi32> to vector<1x4xf32>
    %cst_8 = arith.constant dense<0.000000e+00> : vector<1xf32>
    %38 = vector.multi_reduction <add>, %37, %cst_8 [1] : vector<1x4xf32> to vector<1xf32>
    %39 = vector.shape_cast %38 : vector<1xf32> to vector<1x1xf32>
    %cst_9 = arith.constant dense<0.000000e+00> : vector<1xf32>
    %40 = vector.multi_reduction <add>, %35, %cst_9 [1] : vector<1x4xf32> to vector<1xf32>
    %41 = vector.shape_cast %40 : vector<1xf32> to vector<1x1xf32>
    %42 = arith.divf %41, %39 : vector<1x1xf32>
    %43 = vector.broadcast %42 : vector<1x1xf32> to vector<1x4xf32>
    %44 = arith.subf %35, %43 : vector<1x4xf32>
    %45 = arith.mulf %44, %44 : vector<1x4xf32>
    %cst_10 = arith.constant 0.000000e+00 : f32
    %46 = vector.broadcast %cst_10 : f32 to vector<1x4xf32>
    %47 = arith.select %27, %45, %46 : vector<1x4xi1>, vector<1x4xf32>
    %cst_11 = arith.constant dense<0.000000e+00> : vector<1xf32>
    %48 = vector.multi_reduction <add>, %47, %cst_11 [1] : vector<1x4xf32> to vector<1xf32>
    %49 = vector.shape_cast %48 : vector<1xf32> to vector<1x1xf32>
    %cst_12 = arith.constant 1.000000e+00 : f32
    %50 = vector.broadcast %cst_12 : f32 to vector<1x1xf32>
    %51 = arith.subf %39, %50 : vector<1x1xf32>
    %52 = arith.divf %49, %51 : vector<1x1xf32>
    %53 = math.sqrt %52 : vector<1x1xf32>
    %cst_13 = arith.constant 9.99999993E-9 : f32
    %54 = vector.broadcast %cst_13 : f32 to vector<1x1xf32>
    %55 = arith.addf %42, %54 : vector<1x1xf32>
    %56 = arith.divf %53, %55 : vector<1x1xf32>
    %cst_14 = arith.constant 1.000000e+00 : f32
    %57 = vector.broadcast %cst_14 : f32 to vector<1x1xf32>
    %58 = arith.subf %57, %56 : vector<1x1xf32>
    %cst_15 = arith.constant 0.000000e+00 : f32
    %cst_16 = arith.constant 1.000000e+00 : f32
    %59 = vector.broadcast %cst_15 : f32 to vector<1x1xf32>
    %60 = arith.maximumf %59, %58 : vector<1x1xf32>
    %61 = vector.broadcast %cst_16 : f32 to vector<1x1xf32>
    %62 = arith.minimumf %61, %60 : vector<1x1xf32>
    %c0_17 = arith.constant 0 : index
    %c0_18 = arith.constant 0 : index
    %c0_19 = arith.constant 0 : index
    %63 = vector.load %arg1[%c0_17, %c0_18, %c0_19] : memref<2x4x128xf32, #tpu.memory_space<vmem>>, vector<1x4x128xf32>
    %64 = vector.shape_cast %63 : vector<1x4x128xf32> to vector<4x128xf32>
    %c1 = arith.constant 1 : index
    %c0_20 = arith.constant 0 : index
    %c0_21 = arith.constant 0 : index
    %65 = vector.load %arg1[%c1, %c0_20, %c0_21] : memref<2x4x128xf32, #tpu.memory_space<vmem>>, vector<1x4x128xf32>
    %66 = vector.shape_cast %65 : vector<1x4x128xf32> to vector<4x128xf32>
    %cst_22 = arith.constant dense<0xFF800000> : vector<128xf32>
    %67 = vector.multi_reduction <maximumf>, %64, %cst_22 [0] : vector<4x128xf32> to vector<128xf32>
    %68 = vector.shape_cast %67 : vector<128xf32> to vector<1x128xf32>
    %69 = tpu.iota {dimensions = array<i32: 0>} : vector<4x128xi32>
    %70 = arith.sitofp %69 : vector<4x128xi32> to vector<4x128xf32>
    %71 = vector.broadcast %68 : vector<1x128xf32> to vector<4x128xf32>
    %72 = arith.cmpf oeq, %64, %71 : vector<4x128xf32>
    %cst_23 = arith.constant 4.000000e+00 : f32
    %73 = vector.broadcast %cst_23 : f32 to vector<4x128xf32>
    %74 = arith.select %72, %70, %73 : vector<4x128xi1>, vector<4x128xf32>
    %cst_24 = arith.constant dense<0x7F800000> : vector<128xf32>
    %75 = vector.multi_reduction <minimumf>, %74, %cst_24 [0] : vector<4x128xf32> to vector<128xf32>
    %76 = vector.shape_cast %75 : vector<128xf32> to vector<1x128xf32>
    %cst_25 = arith.constant dense<0xFF800000> : vector<128xf32>
    %77 = vector.multi_reduction <maximumf>, %66, %cst_25 [0] : vector<4x128xf32> to vector<128xf32>
    %78 = vector.shape_cast %77 : vector<128xf32> to vector<1x128xf32>
    %79 = tpu.iota {dimensions = array<i32: 0>} : vector<4x128xi32>
    %80 = arith.sitofp %79 : vector<4x128xi32> to vector<4x128xf32>
    %81 = vector.broadcast %78 : vector<1x128xf32> to vector<4x128xf32>
    %82 = arith.cmpf oeq, %66, %81 : vector<4x128xf32>
    %cst_26 = arith.constant 4.000000e+00 : f32
    %83 = vector.broadcast %cst_26 : f32 to vector<4x128xf32>
    %84 = arith.select %82, %80, %83 : vector<4x128xi1>, vector<4x128xf32>
    %cst_27 = arith.constant dense<0x7F800000> : vector<128xf32>
    %85 = vector.multi_reduction <minimumf>, %84, %cst_27 [0] : vector<4x128xf32> to vector<128xf32>
    %86 = vector.shape_cast %85 : vector<128xf32> to vector<1x128xf32>
    %87 = arith.cmpf one, %76, %86 : vector<1x128xf32>
    %88 = arith.extui %87 : vector<1x128xi1> to vector<1x128xi32>
    %89 = arith.sitofp %88 : vector<1x128xi32> to vector<1x128xf32>
    %cst_28 = arith.constant dense<0.000000e+00> : vector<1xf32>
    %90 = vector.multi_reduction <add>, %89, %cst_28 [1] : vector<1x128xf32> to vector<1xf32>
    %91 = vector.shape_cast %90 : vector<1xf32> to vector<1x1xf32>
    %cst_29 = arith.constant 7.812500e-03 : f32
    %92 = vector.broadcast %cst_29 : f32 to vector<1x1xf32>
    %93 = arith.mulf %91, %92 : vector<1x1xf32>
    %cst_30 = arith.constant 0.000000e+00 : f32
    %cst_31 = arith.constant 1.000000e+00 : f32
    %94 = vector.broadcast %cst_30 : f32 to vector<1x1xf32>
    %95 = arith.maximumf %94, %93 : vector<1x1xf32>
    %96 = vector.broadcast %cst_31 : f32 to vector<1x1xf32>
    %97 = arith.minimumf %96, %95 : vector<1x1xf32>
    %cst_32 = arith.constant 1.000000e+00 : f32
    %98 = vector.broadcast %cst_32 : f32 to vector<1x4xf32>
    %99 = arith.maximumf %18, %98 : vector<1x4xf32>
    %100 = arith.divf %21, %99 : vector<1x4xf32>
    %101 = arith.andi %27, %29 : vector<1x4xi1>
    %cst_33 = arith.constant 1.000000e+09 : f32
    %102 = vector.broadcast %cst_33 : f32 to vector<1x4xf32>
    %103 = arith.select %101, %100, %102 : vector<1x4xi1>, vector<1x4xf32>
    %cst_34 = arith.constant dense<0x7F800000> : vector<1xf32>
    %104 = vector.multi_reduction <minimumf>, %103, %cst_34 [1] : vector<1x4xf32> to vector<1xf32>
    %105 = vector.shape_cast %104 : vector<1xf32> to vector<1x1xf32>
    %cst_35 = arith.constant 1.000000e+00 : f32
    %106 = vector.broadcast %cst_35 : f32 to vector<1x1xf32>
    %107 = arith.minimumf %106, %105 : vector<1x1xf32>
    %108 = tpu.iota {dimensions = array<i32: 1>} : vector<8x128xi32>
    %c0_i32 = arith.constant 0 : i32
    %109 = vector.broadcast %c0_i32 : i32 to vector<8x128xi32>
    %110 = arith.cmpi eq, %108, %109 : vector<8x128xi32>
    %c1_i32 = arith.constant 1 : i32
    %111 = vector.broadcast %c1_i32 : i32 to vector<8x128xi32>
    %112 = arith.cmpi eq, %108, %111 : vector<8x128xi32>
    %c2_i32 = arith.constant 2 : i32
    %113 = vector.broadcast %c2_i32 : i32 to vector<8x128xi32>
    %114 = arith.cmpi eq, %108, %113 : vector<8x128xi32>
    %cst_36 = arith.constant 0.000000e+00 : f32
    %115 = vector.shape_cast %107 : vector<1x1xf32> to vector<1x1xf32>
    %116 = vector.broadcast %115 : vector<1x1xf32> to vector<8x128xf32>
    %117 = vector.broadcast %cst_36 : f32 to vector<8x128xf32>
    %118 = arith.select %114, %116, %117 : vector<8x128xi1>, vector<8x128xf32>
    %119 = vector.shape_cast %97 : vector<1x1xf32> to vector<1x1xf32>
    %120 = vector.broadcast %119 : vector<1x1xf32> to vector<8x128xf32>
    %121 = arith.select %112, %120, %118 : vector<8x128xi1>, vector<8x128xf32>
    %122 = vector.shape_cast %62 : vector<1x1xf32> to vector<1x1xf32>
    %123 = vector.broadcast %122 : vector<1x1xf32> to vector<8x128xf32>
    %124 = arith.select %110, %123, %121 : vector<8x128xi1>, vector<8x128xf32>
    %c0_37 = arith.constant 0 : index
    %c0_38 = arith.constant 0 : index
    %125 = vector.load %arg2[%c0_37, %c0_38] : memref<8x128xf32, #tpu.memory_space<vmem>>, vector<8x128xf32>
    tpu.vector_store %arg2[%c0_37, %c0_38], %124 {strides = array<i32>} : memref<8x128xf32, #tpu.memory_space<vmem>>, vector<8x128xf32>,
    return
  }
}

</mosaic_0001>

<llo_original>
// kernel: tpu_custom_call.1
$region0: #{tpu_custom_call.1}
  #allocation0 [shape = 'u32[]', space=smem, size = 0x4, offset = 0x4, fixed_abs, tag = 'smem constant byte address 0x4 - core index']
  #allocation1 [shape = 'u32[144,128]{1,0:T(1,128)}', space=vmem, size = 0x12000, scoped, tag = 'internal scratch']
  %s0 = inlined_call_operand.hbm [shape: f32[8,64], index: 0, kind: input, shape index: {}]
  %s1 = inlined_call_operand.hbm [shape: f32[2,4,128], index: 1, kind: input, shape index: {}]
  %s2 = inlined_call_operand.hbm [shape: f32[8,128], index: 2, kind: output, shape index: {}]
  %s3 = sld [smem:[#allocation0]]
  $region26: #{tpu_custom_call.1} parent=0
    _
  %s5 = ssub.s32 1, %s3
  %s6 = scalar_select 0, %s5, %s3
  $region1: #{tpu_custom_call.1} parent=0
    #allocation2 [shape = 'u8[4096]{0}', space=vmem, size = 0x1000, scoped, tag = 'input window, operand 0, single buffered']
    #allocation3 [shape = 's32[1]{0}', space=sflag, size = 0x4, scoped, tag = 'scoped memory for tpu_custom_call.1']
    #allocation4 [shape = 's32[1]{0}', space=sflag, size = 0x4, scoped, tag = 'scoped memory for tpu_custom_call.1']
    #allocation5 [shape = 'u8[4096]{0}', space=vmem, size = 0x1000, scoped, tag = 'input window, operand 1, single buffered']
    #allocation6 [shape = 's32[1]{0}', space=sflag, size = 0x4, scoped, tag = 'scoped memory for tpu_custom_call.1']
    #allocation7 [shape = 'u8[4096]{0}', space=vmem, size = 0x1000, scoped, tag = 'output window, operand 0, single buffered']
    %7 = vsyncpa [#allocation3], 0
    %8 = vsyncpa [#allocation6], 0
    %9 = vsyncpa [#allocation4], 0
    // Predicated region
    $region2: #{tpu_custom_call.1} parent=1 // pred_check
      _
    $region3: #{tpu_custom_call.1} parent=1 // pred_check_branch
      %11 = sbr.rel (0) target = $region5
    $region4: #{tpu_custom_call.1} parent=1 // pred_region
      %s13 = ssub.s32 128, 128
      %14 = vsyncadd [#allocation3], %s13
      %s16 = sshll.u32 [#allocation2], 4
      %s17 = int_to_ptr.vmem [resolvable:$true] %s16
      %19 = dma.hbm_to_vmem [thread:$0]  %s0, 128, %s17, [#allocation3]
    $region5: #{tpu_custom_call.1} parent=1 // pred_fallthru
      _
    // Predicated region
    $region6: #{tpu_custom_call.1} parent=1 // pred_check
      _
    $region7: #{tpu_custom_call.1} parent=1 // pred_check_branch
      %21 = sbr.rel (0) target = $region9
    $region8: #{tpu_custom_call.1} parent=1 // pred_region
      %s23 = ssub.s32 128, 128
      %24 = vsyncadd [#allocation6], %s23
      %s25 = sshll.u32 [#allocation5], 4
      %s26 = int_to_ptr.vmem [resolvable:$true] %s25
      %31 = dma.hbm_to_vmem [thread:$0]  %s1, 128, %s26, [#allocation6], 64, 64, 4
    $region9: #{tpu_custom_call.1} parent=1 // pred_fallthru
      _
    // Predicated region
    $region10: #{tpu_custom_call.1} parent=1 // pred_check
      _
    $region11: #{tpu_custom_call.1} parent=1 // pred_check_branch
      %33 = sbr.rel (0) target = $region13
    $region12: #{tpu_custom_call.1} parent=1 // pred_region
      %34 = dma.done [#allocation3], 128
    $region13: #{tpu_custom_call.1} parent=1 // pred_fallthru
      _
    // Predicated region
    $region14: #{tpu_custom_call.1} parent=1 // pred_check
      _
    $region15: #{tpu_custom_call.1} parent=1 // pred_check_branch
      %36 = sbr.rel (0) target = $region17
    $region16: #{tpu_custom_call.1} parent=1 // pred_region
      %37 = dma.done [#allocation6], 128
    $region17: #{tpu_custom_call.1} parent=1 // pred_fallthru
      _
    %v38 = vld [vmem:[#allocation2] sm:$0xff]
    %vm39 = vcmask 519168
    %v40 = vsel %vm39, %v38, -inf
    %v41 = vrot.slane %v40, 4
    %v42 = vmax.f32 %v40, %v41
    %v43 = vrot.slane %v42, 2
    %v44 = vmax.f32 %v42, %v43
    %v45 = vrot.slane %v44, 1
    %v46 = vmax.f32 %v44, %v45
    %v47 = vlaneseq
    %v48 = vshrl.u32 %v47, 7
    %v49 = vcvt.s32.f32 %v48
    %vm50 = vcmp.eq.f32.partialorder %v38, %v46
    %v51 = vsel %vm50, %v49, 4.0
    %v52 = vsel %vm39, %v51, inf
    %v53 = vrot.slane %v52, 4
    %v54 = vmin.f32 %v52, %v53
    %v55 = vrot.slane %v54, 2
    %v56 = vmin.f32 %v54, %v55
    %v57 = vrot.slane %v56, 1
    %v58 = vmin.f32 %v56, %v57
    %vm59 = vcmp.eq.f32.partialorder %v49, %v58
    %v60 = vsel %vm59, 1, 0
    %v61 = vcvt.s32.f32 %v60
    %v63 = vrot.slane %v38, 4
    %vm64 = vcmask 523264
    %v65 = vsel %vm64, %v63, 0
    %v68 = vsel %vm64, %v61, 0
    %70 = vmatprep.subr.mxu0 0.0
    %v71 = vand.u32 %v68, 4294901760
    %72 = vmatpush1.xpose.msra.mxu0 %v71
    %73 = vmatprep.subr.mxu0 0.0
    %74 = vmatpush1.xpose.msra.mxu0 0.0
    %75 = vmatprep.subr.mxu0 0.0
    %76 = vmatpush1.xpose.msra.mxu0 0.0
    %77 = vmatprep.subr.mxu0 0.0
    %78 = vmatpush1.xpose.msra.mxu0 0.0
    %79 = vmatprep.subr.mxu0 0.0
    %80 = vmatpush1.xpose.msra.mxu0 0.0
    %81 = vmatprep.subr.mxu0 0.0
    %82 = vmatpush1.xpose.msra.mxu0 0.0
    %83 = vmatprep.subr.mxu0 0.0
    %84 = vmatpush1.xpose.msra.mxu0 0.0
    %85 = vmatprep.subr.mxu0 0.0
    %86 = vmatpush1.xpose.msra.mxu0 0.0
    %87 = vmatprep.subr.mxu0 0.0
    %88 = vmatpush1.xpose.msra.mxu0 0.0
    %89 = vmatprep.subr.mxu0 0.0
    %90 = vmatpush1.xpose.msra.mxu0 0.0
    %91 = vmatprep.subr.mxu0 0.0
    %92 = vmatpush1.xpose.msra.mxu0 0.0
    %93 = vmatprep.subr.mxu0 0.0
    %94 = vmatpush1.xpose.msra.mxu0 0.0
    %95 = vmatprep.subr.mxu0 0.0
    %96 = vmatpush1.xpose.msra.mxu0 0.0
    %97 = vmatprep.subr.mxu0 0.0
    %98 = vmatpush1.xpose.msra.mxu0 0.0
    %99 = vmatprep.subr.mxu0 0.0
    %100 = vmatpush1.xpose.msra.mxu0 0.0
    %101 = vmatprep.subr.mxu0 0.0
    %102 = vmatpush1.xpose.msra.mxu0 0.0
    %103 = vmatprep.subr.mxu0 0.0
    %104 = vmatpush1.xpose.msra.mxu0 0.0
    %105 = vmatprep.subr.mxu0 0.0
    %106 = vmatpush1.xpose.msra.mxu0 0.0
    %107 = vmatprep.subr.mxu0 0.0
    %108 = vmatpush1.xpose.msra.mxu0 0.0
    %109 = vmatprep.subr.mxu0 0.0
    %110 = vmatpush1.xpose.msra.mxu0 0.0
    %111 = vmatprep.subr.mxu0 0.0
    %112 = vmatpush1.xpose.msra.mxu0 0.0
    %113 = vmatprep.subr.mxu0 0.0
    %114 = vmatpush1.xpose.msra.mxu0 0.0
    %115 = vmatprep.subr.mxu0 0.0
    %116 = vmatpush1.xpose.msra.mxu0 0.0
    %117 = vmatprep.subr.mxu0 0.0
    %118 = vmatpush1.xpose.msra.mxu0 0.0
    %119 = vmatprep.subr.mxu0 0.0
    %120 = vmatpush1.xpose.msra.mxu0 0.0
    %121 = vmatprep.subr.mxu0 0.0
    %122 = vmatpush1.xpose.msra.mxu0 0.0
    %123 = vmatprep.subr.mxu0 0.0
    %124 = vmatpush1.xpose.msra.mxu0 0.0
    %125 = vmatprep.subr.mxu0 0.0
    %126 = vmatpush1.xpose.msra.mxu0 0.0
    %127 = vmatprep.subr.mxu0 0.0
    %128 = vmatpush1.xpose.msra.mxu0 0.0
    %129 = vmatprep.subr.mxu0 0.0
    %130 = vmatpush1.xpose.msra.mxu0 0.0
    %131 = vmatprep.subr.mxu0 0.0
    %132 = vmatpush1.xpose.msra.mxu0 0.0
    %133 = vmatprep.subr.mxu0 0.0
    %134 = vmatpush1.xpose.msra.mxu0 0.0
    %135 = vmatprep.mubr.f32.mxu0 0.0
    %v136 = vand.u32 %v65, 4294901760
    %v137 = vsub.f32 %v65, %v136
    %v138 = vand.u32 %v137, 4294901760
    %v139 = vsub.f32 %v137, %v138
    %v140 = vand.u32 %v139, 4294901760
    %141 = vmatmul.mubr.f32.gmra.mrb[0].mxu0 %v140
    %v142 = vpop.f32.mrb[0].mxu0
    %v143 = vadd.f32 0.0, %v142
    %v144 = vpop.f32.mrb[0].mxu0
    %145 = vdwg.mxu0
    %146 = vmatprep.subr.mxu0 0.0
    %v147 = vand.u32 %v68, 4294901760
    %v148 = vsub.f32 %v68, %v147
    %v149 = vand.u32 %v148, 4294901760
    %v150 = vsub.f32 %v148, %v149
    %v151 = vand.u32 %v150, 4294901760
    %152 = vmatpush1.xpose.msra.mxu0 %v151
    %153 = vmatprep.subr.mxu0 0.0
    %154 = vmatpush1.xpose.msra.mxu0 0.0
    %155 = vmatprep.subr.mxu0 0.0
    %156 = vmatpush1.xpose.msra.mxu0 0.0
    %157 = vmatprep.subr.mxu0 0.0
    %158 = vmatpush1.xpose.msra.mxu0 0.0
    %159 = vmatprep.subr.mxu0 0.0
    %160 = vmatpush1.xpose.msra.mxu0 0.0
    %161 = vmatprep.subr.mxu0 0.0
    %162 = vmatpush1.xpose.msra.mxu0 0.0
    %163 = vmatprep.subr.mxu0 0.0
    %164 = vmatpush1.xpose.msra.mxu0 0.0
    %165 = vmatprep.subr.mxu0 0.0
    %166 = vmatpush1.xpose.msra.mxu0 0.0
    %167 = vmatprep.subr.mxu0 0.0
    %168 = vmatpush1.xpose.msra.mxu0 0.0
    %169 = vmatprep.subr.mxu0 0.0
    %170 = vmatpush1.xpose.msra.mxu0 0.0
    %171 = vmatprep.subr.mxu0 0.0
    %172 = vmatpush1.xpose.msra.mxu0 0.0
    %173 = vmatprep.subr.mxu0 0.0
    %174 = vmatpush1.xpose.msra.mxu0 0.0
    %175 = vmatprep.subr.mxu0 0.0
    %176 = vmatpush1.xpose.msra.mxu0 0.0
    %177 = vmatprep.subr.mxu0 0.0
    %178 = vmatpush1.xpose.msra.mxu0 0.0
    %179 = vmatprep.subr.mxu0 0.0
    %180 = vmatpush1.xpose.msra.mxu0 0.0
    %181 = vmatprep.subr.mxu0 0.0
    %182 = vmatpush1.xpose.msra.mxu0 0.0
    %183 = vmatprep.subr.mxu0 0.0
    %184 = vmatpush1.xpose.msra.mxu0 0.0
    %185 = vmatprep.subr.mxu0 0.0
    %186 = vmatpush1.xpose.msra.mxu0 0.0
    %187 = vmatprep.subr.mxu0 0.0
    %188 = vmatpush1.xpose.msra.mxu0 0.0
    %189 = vmatprep.subr.mxu0 0.0
    %190 = vmatpush1.xpose.msra.mxu0 0.0
    %191 = vmatprep.subr.mxu0 0.0
    %192 = vmatpush1.xpose.msra.mxu0 0.0
    %193 = vmatprep.subr.mxu0 0.0
    %194 = vmatpush1.xpose.msra.mxu0 0.0
    %195 = vmatprep.subr.mxu0 0.0
    %196 = vmatpush1.xpose.msra.mxu0 0.0
    %197 = vmatprep.subr.mxu0 0.0
    %198 = vmatpush1.xpose.msra.mxu0 0.0
    %199 = vmatprep.subr.mxu0 0.0
    %200 = vmatpush1.xpose.msra.mxu0 0.0
    %201 = vmatprep.subr.mxu0 0.0
    %202 = vmatpush1.xpose.msra.mxu0 0.0
    %203 = vmatprep.subr.mxu0 0.0
    %204 = vmatpush1.xpose.msra.mxu0 0.0
    %205 = vmatprep.subr.mxu0 0.0
    %206 = vmatpush1.xpose.msra.mxu0 0.0
    %207 = vmatprep.subr.mxu0 0.0
    %208 = vmatpush1.xpose.msra.mxu0 0.0
    %209 = vmatprep.subr.mxu0 0.0
    %210 = vmatpush1.xpose.msra.mxu0 0.0
    %211 = vmatprep.subr.mxu0 0.0
    %212 = vmatpush1.xpose.msra.mxu0 0.0
    %213 = vmatprep.subr.mxu0 0.0
    %214 = vmatpush1.xpose.msra.mxu0 0.0
    %215 = vmatprep.mubr.f32.mxu0 0.0
    %v216 = vand.u32 %v65, 4294901760
    %217 = vmatmul.mubr.f32.gmra.mrb[0].mxu0 %v216
    %v218 = vpop.f32.mrb[0].mxu0
    %v219 = vadd.f32 %v143, %v218
    %v220 = vpop.f32.mrb[0].mxu0
    %221 = vdwg.mxu0
    %222 = vmatprep.subr.mxu0 0.0
    %v223 = vand.u32 %v68, 4294901760
    %v224 = vsub.f32 %v68, %v223
    %225 = vmatpush1.xpose.msra.mxu0 %v224
    %226 = vmatprep.subr.mxu0 0.0
    %227 = vmatpush1.xpose.msra.mxu0 0.0
    %228 = vmatprep.subr.mxu0 0.0
    %229 = vmatpush1.xpose.msra.mxu0 0.0
    %230 = vmatprep.subr.mxu0 0.0
    %231 = vmatpush1.xpose.msra.mxu0 0.0
    %232 = vmatprep.subr.mxu0 0.0
    %233 = vmatpush1.xpose.msra.mxu0 0.0
    %234 = vmatprep.subr.mxu0 0.0
    %235 = vmatpush1.xpose.msra.mxu0 0.0
    %236 = vmatprep.subr.mxu0 0.0
    %237 = vmatpush1.xpose.msra.mxu0 0.0
    %238 = vmatprep.subr.mxu0 0.0
    %239 = vmatpush1.xpose.msra.mxu0 0.0
    %240 = vmatprep.subr.mxu0 0.0
    %241 = vmatpush1.xpose.msra.mxu0 0.0
    %242 = vmatprep.subr.mxu0 0.0
    %243 = vmatpush1.xpose.msra.mxu0 0.0
    %244 = vmatprep.subr.mxu0 0.0
    %245 = vmatpush1.xpose.msra.mxu0 0.0
    %246 = vmatprep.subr.mxu0 0.0
    %247 = vmatpush1.xpose.msra.mxu0 0.0
    %248 = vmatprep.subr.mxu0 0.0
    %249 = vmatpush1.xpose.msra.mxu0 0.0
    %250 = vmatprep.subr.mxu0 0.0
    %251 = vmatpush1.xpose.msra.mxu0 0.0
    %252 = vmatprep.subr.mxu0 0.0
    %253 = vmatpush1.xpose.msra.mxu0 0.0
    %254 = vmatprep.subr.mxu0 0.0
    %255 = vmatpush1.xpose.msra.mxu0 0.0
    %256 = vmatprep.subr.mxu0 0.0
    %257 = vmatpush1.xpose.msra.mxu0 0.0
    %258 = vmatprep.subr.mxu0 0.0
    %259 = vmatpush1.xpose.msra.mxu0 0.0
    %260 = vmatprep.subr.mxu0 0.0
    %261 = vmatpush1.xpose.msra.mxu0 0.0
    %262 = vmatprep.subr.mxu0 0.0
    %263 = vmatpush1.xpose.msra.mxu0 0.0
    %264 = vmatprep.subr.mxu0 0.0
    %265 = vmatpush1.xpose.msra.mxu0 0.0
    %266 = vmatprep.subr.mxu0 0.0
    %267 = vmatpush1.xpose.msra.mxu0 0.0
    %268 = vmatprep.subr.mxu0 0.0
    %269 = vmatpush1.xpose.msra.mxu0 0.0
    %270 = vmatprep.subr.mxu0 0.0
    %271 = vmatpush1.xpose.msra.mxu0 0.0
    %272 = vmatprep.subr.mxu0 0.0
    %273 = vmatpush1.xpose.msra.mxu0 0.0
    %274 = vmatprep.subr.mxu0 0.0
    %275 = vmatpush1.xpose.msra.mxu0 0.0
    %276 = vmatprep.subr.mxu0 0.0
    %277 = vmatpush1.xpose.msra.mxu0 0.0
    %278 = vmatprep.subr.mxu0 0.0
    %279 = vmatpush1.xpose.msra.mxu0 0.0
    %280 = vmatprep.subr.mxu0 0.0
    %281 = vmatpush1.xpose.msra.mxu0 0.0
    %282 = vmatprep.subr.mxu0 0.0
    %283 = vmatpush1.xpose.msra.mxu0 0.0
    %284 = vmatprep.subr.mxu0 0.0
    %285 = vmatpush1.xpose.msra.mxu0 0.0
    %286 = vmatprep.subr.mxu0 0.0
    %287 = vmatpush1.xpose.msra.mxu0 0.0
    %288 = vmatprep.mubr.f32.mxu0 0.0
    %v289 = vand.u32 %v65, 4294901760
    %v290 = vsub.f32 %v65, %v289
    %291 = vmatmul.mubr.f32.gmra.mrb[0].mxu0 %v290
    %v292 = vpop.f32.mrb[0].mxu0
    %v293 = vadd.f32 %v219, %v292
    %v294 = vpop.f32.mrb[0].mxu0
    %295 = vdwg.mxu0
    %296 = vmatprep.subr.mxu0 0.0
    %v297 = vand.u32 %v68, 4294901760
    %298 = vmatpush1.xpose.msra.mxu0 %v297
    %299 = vmatprep.subr.mxu0 0.0
    %300 = vmatpush1.xpose.msra.mxu0 0.0
    %301 = vmatprep.subr.mxu0 0.0
    %302 = vmatpush1.xpose.msra.mxu0 0.0
    %303 = vmatprep.subr.mxu0 0.0
    %304 = vmatpush1.xpose.msra.mxu0 0.0
    %305 = vmatprep.subr.mxu0 0.0
    %306 = vmatpush1.xpose.msra.mxu0 0.0
    %307 = vmatprep.subr.mxu0 0.0
    %308 = vmatpush1.xpose.msra.mxu0 0.0
    %309 = vmatprep.subr.mxu0 0.0
    %310 = vmatpush1.xpose.msra.mxu0 0.0
    %311 = vmatprep.subr.mxu0 0.0
    %312 = vmatpush1.xpose.msra.mxu0 0.0
    %313 = vmatprep.subr.mxu0 0.0
    %314 = vmatpush1.xpose.msra.mxu0 0.0
    %315 = vmatprep.subr.mxu0 0.0
    %316 = vmatpush1.xpose.msra.mxu0 0.0
    %317 = vmatprep.subr.mxu0 0.0
    %318 = vmatpush1.xpose.msra.mxu0 0.0
    %319 = vmatprep.subr.mxu0 0.0
    %320 = vmatpush1.xpose.msra.mxu0 0.0
    %321 = vmatprep.subr.mxu0 0.0
    %322 = vmatpush1.xpose.msra.mxu0 0.0
    %323 = vmatprep.subr.mxu0 0.0
    %324 = vmatpush1.xpose.msra.mxu0 0.0
    %325 = vmatprep.subr.mxu0 0.0
    %326 = vmatpush1.xpose.msra.mxu0 0.0
    %327 = vmatprep.subr.mxu0 0.0
    %328 = vmatpush1.xpose.msra.mxu0 0.0
    %329 = vmatprep.subr.mxu0 0.0
    %330 = vmatpush1.xpose.msra.mxu0 0.0
    %331 = vmatprep.subr.mxu0 0.0
    %332 = vmatpush1.xpose.msra.mxu0 0.0
    %333 = vmatprep.subr.mxu0 0.0
    %334 = vmatpush1.xpose.msra.mxu0 0.0
    %335 = vmatprep.subr.mxu0 0.0
    %336 = vmatpush1.xpose.msra.mxu0 0.0
    %337 = vmatprep.subr.mxu0 0.0
    %338 = vmatpush1.xpose.msra.mxu0 0.0
    %339 = vmatprep.subr.mxu0 0.0
    %340 = vmatpush1.xpose.msra.mxu0 0.0
    %341 = vmatprep.subr.mxu0 0.0
    %342 = vmatpush1.xpose.msra.mxu0 0.0
    %343 = vmatprep.subr.mxu0 0.0
    %344 = vmatpush1.xpose.msra.mxu0 0.0
    %345 = vmatprep.subr.mxu0 0.0
    %346 = vmatpush1.xpose.msra.mxu0 0.0
    %347 = vmatprep.subr.mxu0 0.0
    %348 = vmatpush1.xpose.msra.mxu0 0.0
    %349 = vmatprep.subr.mxu0 0.0
    %350 = vmatpush1.xpose.msra.mxu0 0.0
    %351 = vmatprep.subr.mxu0 0.0
    %352 = vmatpush1.xpose.msra.mxu0 0.0
    %353 = vmatprep.subr.mxu0 0.0
    %354 = vmatpush1.xpose.msra.mxu0 0.0
    %355 = vmatprep.subr.mxu0 0.0
    %356 = vmatpush1.xpose.msra.mxu0 0.0
    %357 = vmatprep.subr.mxu0 0.0
    %358 = vmatpush1.xpose.msra.mxu0 0.0
    %359 = vmatprep.subr.mxu0 0.0
    %360 = vmatpush1.xpose.msra.mxu0 0.0
    %361 = vmatprep.mubr.f32.mxu0 0.0
    %v362 = vand.u32 %v65, 4294901760
    %v363 = vsub.f32 %v65, %v362
    %v364 = vand.u32 %v363, 4294901760
    %365 = vmatmul.mubr.f32.gmra.mrb[0].mxu0 %v364
    %v366 = vpop.f32.mrb[0].mxu0
    %v367 = vadd.f32 %v293, %v366
    %v368 = vpop.f32.mrb[0].mxu0
    %369 = vdwg.mxu0
    %370 = vmatprep.subr.mxu0 0.0
    %v371 = vand.u32 %v68, 4294901760
    %v372 = vsub.f32 %v68, %v371
    %v373 = vand.u32 %v372, 4294901760
    %374 = vmatpush1.xpose.msra.mxu0 %v373
    %375 = vmatprep.subr.mxu0 0.0
    %376 = vmatpush1.xpose.msra.mxu0 0.0
    %377 = vmatprep.subr.mxu0 0.0
    %378 = vmatpush1.xpose.msra.mxu0 0.0
    %379 = vmatprep.subr.mxu0 0.0
    %380 = vmatpush1.xpose.msra.mxu0 0.0
    %381 = vmatprep.subr.mxu0 0.0
    %382 = vmatpush1.xpose.msra.mxu0 0.0
    %383 = vmatprep.subr.mxu0 0.0
    %384 = vmatpush1.xpose.msra.mxu0 0.0
    %385 = vmatprep.subr.mxu0 0.0
    %386 = vmatpush1.xpose.msra.mxu0 0.0
    %387 = vmatprep.subr.mxu0 0.0
    %388 = vmatpush1.xpose.msra.mxu0 0.0
    %389 = vmatprep.subr.mxu0 0.0
    %390 = vmatpush1.xpose.msra.mxu0 0.0
    %391 = vmatprep.subr.mxu0 0.0
    %392 = vmatpush1.xpose.msra.mxu0 0.0
    %393 = vmatprep.subr.mxu0 0.0
    %394 = vmatpush1.xpose.msra.mxu0 0.0
    %395 = vmatprep.subr.mxu0 0.0
    %396 = vmatpush1.xpose.msra.mxu0 0.0
    %397 = vmatprep.subr.mxu0 0.0
    %398 = vmatpush1.xpose.msra.mxu0 0.0
    %399 = vmatprep.subr.mxu0 0.0
    %400 = vmatpush1.xpose.msra.mxu0 0.0
    %401 = vmatprep.subr.mxu0 0.0
    %402 = vmatpush1.xpose.msra.mxu0 0.0
    %403 = vmatprep.subr.mxu0 0.0
    %404 = vmatpush1.xpose.msra.mxu0 0.0
    %405 = vmatprep.subr.mxu0 0.0
    %406 = vmatpush1.xpose.msra.mxu0 0.0
    %407 = vmatprep.subr.mxu0 0.0
    %408 = vmatpush1.xpose.msra.mxu0 0.0
    %409 = vmatprep.subr.mxu0 0.0
    %410 = vmatpush1.xpose.msra.mxu0 0.0
    %411 = vmatprep.subr.mxu0 0.0
    %412 = vmatpush1.xpose.msra.mxu0 0.0
    %413 = vmatprep.subr.mxu0 0.0
    %414 = vmatpush1.xpose.msra.mxu0 0.0
    %415 = vmatprep.subr.mxu0 0.0
    %416 = vmatpush1.xpose.msra.mxu0 0.0
    %417 = vmatprep.subr.mxu0 0.0
    %418 = vmatpush1.xpose.msra.mxu0 0.0
    %419 = vmatprep.subr.mxu0 0.0
    %420 = vmatpush1.xpose.msra.mxu0 0.0
    %421 = vmatprep.subr.mxu0 0.0
    %422 = vmatpush1.xpose.msra.mxu0 0.0
    %423 = vmatprep.subr.mxu0 0.0
    %424 = vmatpush1.xpose.msra.mxu0 0.0
    %425 = vmatprep.subr.mxu0 0.0
    %426 = vmatpush1.xpose.msra.mxu0 0.0
    %427 = vmatprep.subr.mxu0 0.0
    %428 = vmatpush1.xpose.msra.mxu0 0.0
    %429 = vmatprep.subr.mxu0 0.0
    %430 = vmatpush1.xpose.msra.mxu0 0.0
    %431 = vmatprep.subr.mxu0 0.0
    %432 = vmatpush1.xpose.msra.mxu0 0.0
    %433 = vmatprep.subr.mxu0 0.0
    %434 = vmatpush1.xpose.msra.mxu0 0.0
    %435 = vmatprep.subr.mxu0 0.0
    %436 = vmatpush1.xpose.msra.mxu0 0.0
    %437 = vmatprep.mubr.f32.mxu0 0.0
    %v438 = vand.u32 %v65, 4294901760
    %439 = vmatmul.mubr.f32.gmra.mrb[0].mxu0 %v438
    %v440 = vpop.f32.mrb[0].mxu0
    %v441 = vadd.f32 %v367, %v440
    %v442 = vpop.f32.mrb[0].mxu0
    %443 = vdwg.mxu0
    %444 = vmatprep.subr.mxu0 0.0
    %v445 = vand.u32 %v68, 4294901760
    %446 = vmatpush1.xpose.msra.mxu0 %v445
    %447 = vmatprep.subr.mxu0 0.0
    %448 = vmatpush1.xpose.msra.mxu0 0.0
    %449 = vmatprep.subr.mxu0 0.0
    %450 = vmatpush1.xpose.msra.mxu0 0.0
    %451 = vmatprep.subr.mxu0 0.0
    %452 = vmatpush1.xpose.msra.mxu0 0.0
    %453 = vmatprep.subr.mxu0 0.0
    %454 = vmatpush1.xpose.msra.mxu0 0.0
    %455 = vmatprep.subr.mxu0 0.0
    %456 = vmatpush1.xpose.msra.mxu0 0.0
    %457 = vmatprep.subr.mxu0 0.0
    %458 = vmatpush1.xpose.msra.mxu0 0.0
    %459 = vmatprep.subr.mxu0 0.0
    %460 = vmatpush1.xpose.msra.mxu0 0.0
    %461 = vmatprep.subr.mxu0 0.0
    %462 = vmatpush1.xpose.msra.mxu0 0.0
    %463 = vmatprep.subr.mxu0 0.0
    %464 = vmatpush1.xpose.msra.mxu0 0.0
    %465 = vmatprep.subr.mxu0 0.0
    %466 = vmatpush1.xpose.msra.mxu0 0.0
    %467 = vmatprep.subr.mxu0 0.0
    %468 = vmatpush1.xpose.msra.mxu0 0.0
    %469 = vmatprep.subr.mxu0 0.0
    %470 = vmatpush1.xpose.msra.mxu0 0.0
    %471 = vmatprep.subr.mxu0 0.0
    %472 = vmatpush1.xpose.msra.mxu0 0.0
    %473 = vmatprep.subr.mxu0 0.0
    %474 = vmatpush1.xpose.msra.mxu0 0.0
    %475 = vmatprep.subr.mxu0 0.0
    %476 = vmatpush1.xpose.msra.mxu0 0.0
    %477 = vmatprep.subr.mxu0 0.0
    %478 = vmatpush1.xpose.msra.mxu0 0.0
    %479 = vmatprep.subr.mxu0 0.0
    %480 = vmatpush1.xpose.msra.mxu0 0.0
    %481 = vmatprep.subr.mxu0 0.0
    %482 = vmatpush1.xpose.msra.mxu0 0.0
    %483 = vmatprep.subr.mxu0 0.0
    %484 = vmatpush1.xpose.msra.mxu0 0.0
    %485 = vmatprep.subr.mxu0 0.0
    %486 = vmatpush1.xpose.msra.mxu0 0.0
    %487 = vmatprep.subr.mxu0 0.0
    %488 = vmatpush1.xpose.msra.mxu0 0.0
    %489 = vmatprep.subr.mxu0 0.0
    %490 = vmatpush1.xpose.msra.mxu0 0.0
    %491 = vmatprep.subr.mxu0 0.0
    %492 = vmatpush1.xpose.msra.mxu0 0.0
    %493 = vmatprep.subr.mxu0 0.0
    %494 = vmatpush1.xpose.msra.mxu0 0.0
    %495 = vmatprep.subr.mxu0 0.0
    %496 = vmatpush1.xpose.msra.mxu0 0.0
    %497 = vmatprep.subr.mxu0 0.0
    %498 = vmatpush1.xpose.msra.mxu0 0.0
    %499 = vmatprep.subr.mxu0 0.0
    %500 = vmatpush1.xpose.msra.mxu0 0.0
    %501 = vmatprep.subr.mxu0 0.0
    %502 = vmatpush1.xpose.msra.mxu0 0.0
    %503 = vmatprep.subr.mxu0 0.0
    %504 = vmatpush1.xpose.msra.mxu0 0.0
    %505 = vmatprep.subr.mxu0 0.0
    %506 = vmatpush1.xpose.msra.mxu0 0.0
    %507 = vmatprep.subr.mxu0 0.0
    %508 = vmatpush1.xpose.msra.mxu0 0.0
    %509 = vmatprep.mubr.f32.mxu0 0.0
    %v510 = vand.u32 %v65, 4294901760
    %511 = vmatmul.mubr.f32.gmra.mrb[0].mxu0 %v510
    %v512 = vpop.f32.mrb[0].mxu0
    %v513 = vadd.f32 %v441, %v512
    %v514 = vpop.f32.mrb[0].mxu0
    %515 = vdwg.mxu0
    %v516 = vsel %vm64, %v58, -inf
    %517 = vmax.xlane.f32.xlu0 %v516
    %v518 = vpop.xlane.xlu0 %517
    %v519 = vlaneseq
    %v520 = vand.u32 %v519, 127
    %v521 = vcvt.s32.f32 %v520
    %vm522 = vcmp.le.f32.partialorder %v521, %v518
    %vm523 = vcmp.gt.f32.partialorder %v513, 0.0
    %vm524 = vmand %vm522, %vm523
    %v526 = vrot.slane %v513, 1
    %v528 = vadd.f32 %v513, %v526
    %v529 = vmul.f32 %v528, 0.5
    %v531 = vrot.slane %v529, 1
    %v533 = vsel %vm524, %v531, 0.0
    %v534 = vsel %vm522, 1, 0
    %v535 = vcvt.s32.f32 %v534
    %vm536 = vcmask 31744
    %v537 = vsel %vm536, %v535, 0.0
    %538 = vadd.xlane.f32.xlu0 %v537
    %v539 = vpop.xlane.xlu0 %538
    %vm540 = vcmask 24576
    %v541 = vsel %vm540, %v533, 0.0
    %542 = vadd.xlane.f32.xlu0 %v541
    %v543 = vpop.xlane.xlu0 %542
    %v544 = vrcp.pop %v539
    %v545 = vmul.f32 %v543, %v544
    %v546 = vsub.f32 %v533, %v545
    %v547 = vmul.f32 %v546, %v546
    %v548 = vsel %vm522, %v547, 0.0
    %v549 = vsel %vm540, %v548, 0.0
    %550 = vadd.xlane.f32.xlu0 %v549
    %v551 = vpop.xlane.xlu0 %550
    %v552 = vsub.f32 %v539, 1.0
    %v553 = vrcp.pop %v552
    %v554 = vmul.f32 %v551, %v553
    %v555 = vrsqrt.pop %v554
    %v556 = vmul.f32 %v554, %v555
    %vm557 = vcmp.eq.f32.partialorder %v554, inf
    %v558 = vsel %vm557, %v554, %v556
    %vm559 = vcmp.eq.f32.partialorder %v554, 0.0
    %v560 = vand.u32 %v554, 2147483648
    %v561 = vsel %vm559, %v560, %v558
    %v562 = vadd.f32 %v545, 1e-08
    %v563 = vrcp.pop %v562
    %v564 = vmul.f32 %v561, %v563
    %v565 = vsub.f32 1.0, %v564
    %v566 = vmax.f32 %v565, 0.0
    %v567 = vmin.f32 %v566, 1.0
    %v568 = vld [vmem:[#allocation5] sm:$0xf]
    %s569 = scalar_lea.vmem [#allocation5], 4
    %v570 = vld [vmem:[%s569] sm:$0xf]
    %vm571 = vcmask 1043456
    %v572 = vsel %vm571, %v568, -inf
    %v573 = vrot.slane %v572, 4
    %v574 = vmax.f32 %v572, %v573
    %v575 = vrot.slane %v574, 2
    %v576 = vmax.f32 %v574, %v575
    %v577 = vrot.slane %v576, 1
    %v578 = vmax.f32 %v576, %v577
    %vm579 = vcmp.eq.f32.partialorder %v568, %v578
    %v580 = vsel %vm579, %v49, 4.0
    %v581 = vsel %vm571, %v580, inf
    %v582 = vrot.slane %v581, 4
    %v583 = vmin.f32 %v581, %v582
    %v584 = vrot.slane %v583, 2
    %v585 = vmin.f32 %v583, %v584
    %v586 = vrot.slane %v585, 1
    %v587 = vmin.f32 %v585, %v586
    %v588 = vsel %vm571, %v570, -inf
    %v589 = vrot.slane %v588, 4
    %v590 = vmax.f32 %v588, %v589
    %v591 = vrot.slane %v590, 2
    %v592 = vmax.f32 %v590, %v591
    %v593 = vrot.slane %v592, 1
    %v594 = vmax.f32 %v592, %v593
    %vm595 = vcmp.eq.f32.partialorder %v570, %v594
    %v596 = vsel %vm595, %v49, 4.0
    %v597 = vsel %vm571, %v596, inf
    %v598 = vrot.slane %v597, 4
    %v599 = vmin.f32 %v597, %v598
    %v600 = vrot.slane %v599, 2
    %v601 = vmin.f32 %v599, %v600
    %v602 = vrot.slane %v601, 1
    %v603 = vmin.f32 %v601, %v602
    %vm604 = vcmp.ne.f32.partialorder %v587, %v603
    %v605 = vsel %vm604, 1, 0
    %v606 = vcvt.s32.f32 %v605
    %607 = vadd.xlane.f32.xlu0 %v606
    %v608 = vpop.xlane.xlu0 %607
    %v609 = vmul.f32 %v608, 0.0078125
    %v610 = vmax.f32 %v609, 0.0
    %v611 = vmin.f32 %v610, 1.0
    %v612 = vmax.f32 %v513, 1.0
    %v614 = vrot.slane %v612, 5
    %v616 = vrcp.pop %v614
    %v617 = vmul.f32 %v513, %v616
    %v619 = vrot.slane %v617, 3
    %v621 = vsel %vm524, %v619, 1e+09
    %v622 = vsel %vm540, %v621, inf
    %623 = vmin.xlane.f32.xlu0 %v622
    %v624 = vpop.xlane.xlu0 %623
    %v625 = vmin.f32 %v624, 1.0
    %vm626 = vcmp.eq.s32.totalorder %v520, 0
    %vm627 = vcmp.eq.s32.totalorder %v520, 1
    %vm628 = vcmp.eq.s32.totalorder %v520, 2
    %v629 = vlaneseq
    %v630 = vshrl.u32 %v629, 7
    %v631 = vsub.s32 0, %v630
    %v632 = vrot.slane %v625, %v631
    %v633 = vsel %vm628, %v632, 0.0
    %v634 = vsel %vm627, %v611, %v633
    %v635 = vlaneseq
    %v636 = vshrl.u32 %v635, 7
    %v637 = vsub.s32 0, %v636
    %v638 = vrot.slane %v567, %v637
    %v639 = vsel %vm626, %v638, %v634
    %640 = vst [vmem:[#allocation7] sm:$0xff] %v639
    // Predicated region
    $region18: #{tpu_custom_call.1} parent=1 // pred_check
      _
    $region19: #{tpu_custom_call.1} parent=1 // pred_check_branch
      %642 = sbr.rel (0) target = $region21
    $region20: #{tpu_custom_call.1} parent=1 // pred_region
      %s644 = ssub.s32 128, 128
      %645 = vsyncadd [#allocation4], %s644
      %s647 = sshll.u32 [#allocation7], 4
      %s648 = int_to_ptr.vmem [resolvable:$true] %s647
      %650 = dma.vmem_to_hbm [thread:$0]  %s648, 128, %s2, [#allocation4]
    $region21: #{tpu_custom_call.1} parent=1 // pred_fallthru
      _
    // Predicated region
    $region22: #{tpu_custom_call.1} parent=1 // pred_check
      _
    $region23: #{tpu_custom_call.1} parent=1 // pred_check_branch
      %652 = sbr.rel (0) target = $region25
    $region24: #{tpu_custom_call.1} parent=1 // pred_region
      %653 = dma.done [#allocation4], 128
    $region25: #{tpu_custom_call.1} parent=1 // pred_fallthru
      _
    %654 = vsyncpa [#allocation3], 1
    %655 = vsyncpa [#allocation6], 1
    %656 = vsyncpa [#allocation4], 1

</llo_original>
